<compile_context>
chip_gen: v5e
topology: v5e:2x2
jax: 0.10.0
libtpu: 0.0.40
codegen_flags: <defaults>
</compile_context>

<pallas_src>
import jax
import jax.numpy as jnp
from jax.experimental import pallas as pl
from jax.experimental.pallas import tpu as pltpu

# ------------------------------ hyper-parameters -----------------------------
B = 2                     # batch
IN_CHANNELS = 4           # input_channels (label channels)
NUM_CHANNELS = (8, 8)     # num_channels -> 2 TemporalBlocks, hidden width 8
KERNEL_SIZE = 3           # kernel_size (small toy config)
NUM_PSEUDO_INPUTS = 5     # num_pseudo_inputs (fcl output width)
SEQ_LEN = 16              # time steps in the label sequence

NB_BLOCKS = len(NUM_CHANNELS)
DILATIONS = tuple(2 ** i for i in range(NB_BLOCKS))

LANES = 128                                   # lane-dense activation width
assert B * SEQ_LEN <= LANES
CIN_PAD = ((IN_CHANNELS + 7) // 8) * 8        # pad input channels to sublanes
SLAB_W = 128                                  # packed parameter slab width


# ------------------------------- fused kernel --------------------------------
def _make_kernel(layout, block_cfg):
    K, T = KERNEL_SIZE, SEQ_LEN

    def kernel(label_ref, slab_ref, o_ref):
        def getp(name):
            r0, r, c = layout[name]                 # static row/col offsets
            return slab_ref[r0:r0 + r, 0:c]

        # Hoisted causal / batch-boundary zero masks (one per distinct shift).
        shifts = sorted({(K - 1 - k) * cfg["dil"]
                         for cfg in block_cfg for k in range(K)} - {0})
        tpos = jax.lax.broadcasted_iota(jnp.int32, (1, LANES), 1) % T
        mask = {s: (tpos >= s).astype(jnp.float32) for s in shifts}

        def shifted(x, s):
            # x delayed by s lanes with zero fill at causal/batch boundaries.
            return x if s == 0 else pltpu.roll(x, shift=s, axis=1) * mask[s]

        h = label_ref[...]                          # (CIN_PAD, LANES)
        for i, cfg in enumerate(block_cfg):
            cout, dil, has_down = cfg["cout"], cfg["dil"], cfg["has_down"]

            # conv1: sum of K shifted matmuls; 1x1 downsample folded into the
            # k = K-1 (unshifted) tap for channel-changing blocks.
            acc, res = None, None
            for k in range(K):
                hk = shifted(h, (K - 1 - k) * dil)
                y = jnp.dot(getp(f"b{i}_w1_{k}"), hk,
                            preferred_element_type=jnp.float32)
                if has_down and k == K - 1:
                    res = y[cout:2 * cout, :] + getp(f"b{i}_db")
                    y = y[0:cout, :]
                acc = y if acc is None else acc + y
            h1 = jnp.maximum(acc + getp(f"b{i}_b1"), 0.0)
            if res is None:                          # identity residual
                res = h

            # conv2
            acc = None
            for k in range(K):
                hk = shifted(h1, (K - 1 - k) * dil)
                y = jnp.dot(getp(f"b{i}_w2_{k}"), hk,
                            preferred_element_type=jnp.float32)
                acc = y if acc is None else acc + y
            h2 = jnp.maximum(acc + getp(f"b{i}_b2"), 0.0)
            h = jnp.maximum(h2 + res, 0.0)           # ReLU(out + res)

        # fcl on the last time step of each sequence, via a one-hot selector
        # matmul (no VMEM staging of the (C_last, B) operand).
        proj = jnp.dot(getp("fcl_w"), h, preferred_element_type=jnp.float32)
        last = jnp.dot(proj, getp("sel"), preferred_element_type=jnp.float32)
        o_ref[...] = last + getp("fcl_b")

    return kernel


def make_forward(layout, block_cfg):
    kernel = _make_kernel(layout, block_cfg)

    @jax.jit
    def forward(slab, label):
        # PyTorch: if label.shape[1] != in_chan: label = label.permute(0, 2, 1)
        if label.shape[1] != IN_CHANNELS:
            label = jnp.transpose(label, (0, 2, 1))
        # layout plumbing: fold batch into the lane axis, pad to 128 lanes and
        # 8 sublanes (zero pad; zero weight columns make it inert).
        x = jnp.transpose(label, (1, 0, 2)).reshape(IN_CHANNELS, B * SEQ_LEN)
        x = jnp.pad(x.astype(jnp.float32),
                    ((0, CIN_PAD - IN_CHANNELS), (0, LANES - B * SEQ_LEN)))

        out_pb = pl.pallas_call(
            kernel,
            out_shape=jax.ShapeDtypeStruct((NUM_PSEUDO_INPUTS, B), jnp.float32),
            grid=(1,),
            in_specs=[pl.BlockSpec(x.shape, lambda i: (0, 0)),
                      pl.BlockSpec(slab.shape, lambda i: (0, 0))],
            out_specs=pl.BlockSpec((NUM_PSEUDO_INPUTS, B), lambda i: (0, 0)),
            compiler_params=pltpu.CompilerParams(
                dimension_semantics=("arbitrary",)),
        )(x, slab)
        # (P, B) -> (1, B, P), matching `label.unsqueeze(0)` in the module.
        return jnp.transpose(out_pb)[None, :, :]

    return forward


# ------------------------------ parameter setup ------------------------------
def init_params(key):
    """Random parameters in PyTorch layouts (weight_norm folded, eval mode)."""
    def nrm(k, shape, scale=0.1):
        return scale * jax.random.normal(k, shape, dtype=jnp.float32)

    keys = iter(jax.random.split(key, 6 * NB_BLOCKS + 2))
    blocks = []
    cin = IN_CHANNELS
    for i, cout in enumerate(NUM_CHANNELS):
        blk = {
            "dil": DILATIONS[i],
            "w1": nrm(next(keys), (cout, cin, KERNEL_SIZE)),   # Conv1d weight
            "b1": nrm(next(keys), (cout,)),
            "w2": nrm(next(keys), (cout, cout, KERNEL_SIZE)),
            "b2": nrm(next(keys), (cout,)),
        }
        if cin != cout:
            blk["down_w"] = nrm(next(keys), (cout, cin, 1))
            blk["down_b"] = nrm(next(keys), (cout,))
        else:
            blk["down_w"], blk["down_b"] = None, None
            next(keys), next(keys)     # keep the key stream deterministic
        blocks.append(blk)
        cin = cout

    return {"blocks": blocks,
            "fcl_w": nrm(next(keys), (NUM_PSEUDO_INPUTS, NUM_CHANNELS[-1])),
            "fcl_b": nrm(next(keys), (NUM_PSEUDO_INPUTS,))}


def prepare_params(params):
    """One-time relayout of ALL parameters into a single (rows, 128) f32 slab
    (one DMA), plus a static {name: (row_off, rows, cols)} layout and static
    per-block config.  Conv weights are split per tap k (roll-based conv);
    the 1x1 downsample is row-stacked under tap K-1; biases are lane-replicated;
    the fcl last-step selector is a one-hot (LANES, B) operand."""
    mats = []

    def add(name, m):
        mats.append((name, jnp.asarray(m, jnp.float32)))

    block_cfg = []
    cin = IN_CHANNELS
    for i, (blk, cout) in enumerate(zip(params["blocks"], NUM_CHANNELS)):
        cin_p = ((cin + 7) // 8) * 8
        has_down = blk["down_w"] is not None
        for k in range(KERNEL_SIZE):
            wk = jnp.zeros((cout, cin_p), jnp.float32).at[:, :cin].set(
                blk["w1"][:, :, k])
            if has_down and k == KERNEL_SIZE - 1:
                dw = jnp.zeros((cout, cin_p), jnp.float32).at[:, :cin].set(
                    blk["down_w"].reshape(cout, cin))
                add(f"b{i}_w1_{k}", jnp.concatenate([wk, dw], axis=0))
            else:
                add(f"b{i}_w1_{k}", wk)
        add(f"b{i}_b1", jnp.tile(blk["b1"].reshape(cout, 1), (1, SLAB_W)))
        for k in range(KERNEL_SIZE):
            add(f"b{i}_w2_{k}", blk["w2"][:, :, k])
        add(f"b{i}_b2", jnp.tile(blk["b2"].reshape(cout, 1), (1, SLAB_W)))
        if has_down:
            add(f"b{i}_db",
                jnp.tile(blk["down_b"].reshape(cout, 1), (1, SLAB_W)))
        block_cfg.append({"cout": cout, "dil": blk["dil"],
                          "has_down": has_down})
        cin = cout

    add("fcl_w", params["fcl_w"])
    add("fcl_b", jnp.tile(params["fcl_b"].reshape(-1, 1), (1, B)))
    sel = jnp.zeros((LANES, B), jnp.float32)
    for b in range(B):
        sel = sel.at[b * SEQ_LEN + SEQ_LEN - 1, b].set(1.0)
    add("sel", sel)

    layout, chunks, row = {}, [], 0
    for name, m in mats:
        r, c = m.shape
        rp = ((r + 7) // 8) * 8                    # sublane-aligned row blocks
        layout[name] = (row, r, c)
        chunks.append(jnp.zeros((rp, SLAB_W), jnp.float32).at[:r, :c].set(m))
        row += rp
    slab = jnp.concatenate(chunks, axis=0)
    return slab, layout, tuple(block_cfg)


# ------------------------- plain-JAX reference (check) -----------------------
def _reference_forward(params, label):
    if label.shape[1] != IN_CHANNELS:
        label = jnp.transpose(label, (0, 2, 1))
    hp = jax.lax.Precision.HIGHEST

    def causal_conv(x, w, b, dil):
        K = w.shape[2]
        pad = (K - 1) * dil
        xp = jnp.pad(x, ((0, 0), (0, 0), (pad, 0)))
        y = jnp.zeros((x.shape[0], w.shape[0], x.shape[2]), jnp.float32)
        for k in range(K):
            xs = xp[:, :, k * dil:k * dil + x.shape[2]]
            y = y + jnp.einsum("oc,bct->bot", w[:, :, k], xs, precision=hp)
        return y + b[None, :, None]

    h = label
    for blk in params["blocks"]:
        res = h if blk["down_w"] is None else causal_conv(
            h, blk["down_w"], blk["down_b"], 1)
        h1 = jax.nn.relu(causal_conv(h, blk["w1"], blk["b1"], blk["dil"]))
        h2 = jax.nn.relu(causal_conv(h1, blk["w2"], blk["b2"], blk["dil"]))
        h = jax.nn.relu(h2 + res)
    feat = h[:, :, -1]                                        # (B, C_last)
    out = jnp.dot(feat, params["fcl_w"].T, precision=hp) + params["fcl_b"][None]
    return out[None, :, :]                                    # (1, B, P)


# ------------------------------------ main -----------------------------------
if __name__ == "__main__":
    key = jax.random.PRNGKey(0)
    kp, kl = jax.random.split(key, 2)

    params = init_params(kp)
    slab, layout, block_cfg = prepare_params(params)
    forward = make_forward(layout, block_cfg)

    label = jax.random.normal(kl, (B, IN_CHANNELS, SEQ_LEN), dtype=jnp.float32)

    out = jax.block_until_ready(forward(slab, label))

    assert out.shape == (1, B, NUM_PSEUDO_INPUTS), out.shape
    assert out.dtype == jnp.float32

    # sanity-check against the plain-JAX reference of the same module
    ref = _reference_forward(params, label)
    max_err = float(jnp.max(jnp.abs(out - ref)))
    assert jnp.allclose(out, ref, atol=5e-5, rtol=5e-5), max_err

    print("KERNEL_OK")
</pallas_src>

<mosaic_0001>
module attributes {stable_mosaic.version = 11 : i64} {
  func.func @kernel(%arg0: i32, %arg1: memref<8x128xf32, #tpu.memory_space<vmem>>, %arg2: memref<288x128xf32, #tpu.memory_space<vmem>>, %arg3: memref<5x2xf32, #tpu.memory_space<vmem>>) attributes {dimension_semantics = [#tpu.dimension_semantics<arbitrary>], iteration_bounds = array<i64: 1>, scalar_prefetch = 0 : i64, scratch_operands = 0 : i64, tpu.core_type = #tpu.core_type<tc>, window_params = [{pipeline_mode = #tpu.pipeline_mode<synchronous>, transform_indices = @transform_0, window_bounds = array<i64: 8, 128>}, {pipeline_mode = #tpu.pipeline_mode<synchronous>, transform_indices = @transform_1, window_bounds = array<i64: 288, 128>}, {pipeline_mode = #tpu.pipeline_mode<synchronous>, transform_indices = @transform_2, window_bounds = array<i64: 5, 2>}]} {
    %0 = tpu.iota {dimensions = array<i32: 1>} : vector<1x128xi32>
    %c16_i32 = arith.constant 16 : i32
    %c0_i32 = arith.constant 0 : i32
    %1 = arith.cmpi eq, %c16_i32, %c0_i32 : i32
    %c1_i32 = arith.constant 1 : i32
    %2 = arith.select %1, %c1_i32, %c16_i32 : i32
    %3 = vector.broadcast %2 : i32 to vector<1x128xi32>
    %4 = arith.remsi %0, %3 : vector<1x128xi32>
    %c0_i32_0 = arith.constant 0 : i32
    %5 = vector.broadcast %c0_i32_0 : i32 to vector<1x128xi32>
    %6 = arith.cmpi ne, %4, %5 : vector<1x128xi32>
    %c0_i32_1 = arith.constant 0 : i32
    %7 = vector.broadcast %c0_i32_1 : i32 to vector<1x128xi32>
    %8 = arith.cmpi slt, %4, %7 : vector<1x128xi32>
    %c0_i32_2 = arith.constant 0 : i32
    %9 = arith.cmpi slt, %2, %c0_i32_2 : i32
    %10 = vector.broadcast %9 : i1 to vector<1x128xi1>
    %11 = vector.broadcast %10 : vector<1x128xi1> to vector<1x128xi1>
    %12 = arith.xori %8, %11 : vector<1x128xi1>
    %13 = arith.andi %12, %6 : vector<1x128xi1>
    %14 = vector.broadcast %2 : i32 to vector<1x128xi32>
    %15 = arith.addi %4, %14 : vector<1x128xi32>
    %16 = arith.select %13, %15, %4 : vector<1x128xi1>, vector<1x128xi32>
    %c1_i32_3 = arith.constant 1 : i32
    %17 = vector.broadcast %c1_i32_3 : i32 to vector<1x128xi32>
    %18 = arith.cmpi sge, %16, %17 : vector<1x128xi32>
    %19 = arith.extui %18 : vector<1x128xi1> to vector<1x128xi32>
    %20 = arith.sitofp %19 : vector<1x128xi32> to vector<1x128xf32>
    %c2_i32 = arith.constant 2 : i32
    %21 = vector.broadcast %c2_i32 : i32 to vector<1x128xi32>
    %22 = arith.cmpi sge, %16, %21 : vector<1x128xi32>
    %23 = arith.extui %22 : vector<1x128xi1> to vector<1x128xi32>
    %24 = arith.sitofp %23 : vector<1x128xi32> to vector<1x128xf32>
    %c4_i32 = arith.constant 4 : i32
    %25 = vector.broadcast %c4_i32 : i32 to vector<1x128xi32>
    %26 = arith.cmpi sge, %16, %25 : vector<1x128xi32>
    %27 = arith.extui %26 : vector<1x128xi1> to vector<1x128xi32>
    %28 = arith.sitofp %27 : vector<1x128xi32> to vector<1x128xf32>
    %c0 = arith.constant 0 : index
    %c0_4 = arith.constant 0 : index
    %29 = vector.load %arg1[%c0, %c0_4] : memref<8x128xf32, #tpu.memory_space<vmem>>, vector<8x128xf32>
    %c2_i32_5 = arith.constant 2 : i32
    %30 = tpu.dynamic_rotate %29 by %c2_i32_5 dim 1 : vector<8x128xf32>, i32 -> vector<8x128xf32>
    %31 = vector.broadcast %24 : vector<1x128xf32> to vector<8x128xf32>
    %32 = arith.mulf %30, %31 : vector<8x128xf32>
    %c0_6 = arith.constant 0 : index
    %c0_7 = arith.constant 0 : index
    %33 = vector.load %arg2[%c0_6, %c0_7] : memref<288x128xf32, #tpu.memory_space<vmem>>, vector<8x8xf32>
    %cst = arith.constant dense<0.000000e+00> : vector<8x128xf32>
    %34 = tpu.matmul %33, %32, %cst {dimension_numbers = #tpu.dot_dimension_numbers<[1], [0], [0], [1], [0, 0, 1, 1], [], []>} : vector<8x8xf32>, vector<8x128xf32>, vector<8x128xf32> -> vector<8x128xf32>
    %c1_i32_8 = arith.constant 1 : i32
    %35 = tpu.dynamic_rotate %29 by %c1_i32_8 dim 1 : vector<8x128xf32>, i32 -> vector<8x128xf32>
    %36 = vector.broadcast %20 : vector<1x128xf32> to vector<8x128xf32>
    %37 = arith.mulf %35, %36 : vector<8x128xf32>
    %c8 = arith.constant 8 : index
    %c0_9 = arith.constant 0 : index
    %38 = vector.load %arg2[%c8, %c0_9] : memref<288x128xf32, #tpu.memory_space<vmem>>, vector<8x8xf32>
    %cst_10 = arith.constant dense<0.000000e+00> : vector<8x128xf32>
    %39 = tpu.matmul %38, %37, %cst_10 {dimension_numbers = #tpu.dot_dimension_numbers<[1], [0], [0], [1], [0, 0, 1, 1], [], []>} : vector<8x8xf32>, vector<8x128xf32>, vector<8x128xf32> -> vector<8x128xf32>
    %40 = arith.addf %34, %39 : vector<8x128xf32>
    %c16 = arith.constant 16 : index
    %c0_11 = arith.constant 0 : index
    %41 = vector.load %arg2[%c16, %c0_11] : memref<288x128xf32, #tpu.memory_space<vmem>>, vector<16x8xf32>
    %cst_12 = arith.constant dense<0.000000e+00> : vector<16x128xf32>
    %42 = tpu.matmul %41, %29, %cst_12 {dimension_numbers = #tpu.dot_dimension_numbers<[1], [0], [0], [1], [0, 0, 1, 1], [], []>} : vector<16x8xf32>, vector<8x128xf32>, vector<16x128xf32> -> vector<16x128xf32>
    %43 = vector.extract_strided_slice %42 {offsets = [8, 0], sizes = [8, 128], strides = [1, 1]} : vector<16x128xf32> to vector<8x128xf32>
    %c72 = arith.constant 72 : index
    %c0_13 = arith.constant 0 : index
    %44 = vector.load %arg2[%c72, %c0_13] : memref<288x128xf32, #tpu.memory_space<vmem>>, vector<8x128xf32>
    %45 = arith.addf %43, %44 : vector<8x128xf32>
    %46 = vector.extract_strided_slice %42 {offsets = [0, 0], sizes = [8, 128], strides = [1, 1]} : vector<16x128xf32> to vector<8x128xf32>
    %47 = arith.addf %40, %46 : vector<8x128xf32>
    %c32 = arith.constant 32 : index
    %c0_14 = arith.constant 0 : index
    %48 = vector.load %arg2[%c32, %c0_14] : memref<288x128xf32, #tpu.memory_space<vmem>>, vector<8x128xf32>
    %49 = arith.addf %47, %48 : vector<8x128xf32>
    %cst_15 = arith.constant 0.000000e+00 : f32
    %50 = vector.broadcast %cst_15 : f32 to vector<8x128xf32>
    %51 = arith.maximumf %49, %50 : vector<8x128xf32>
    %c2_i32_16 = arith.constant 2 : i32
    %52 = tpu.dynamic_rotate %51 by %c2_i32_16 dim 1 : vector<8x128xf32>, i32 -> vector<8x128xf32>
    %53 = vector.broadcast %24 : vector<1x128xf32> to vector<8x128xf32>
    %54 = arith.mulf %52, %53 : vector<8x128xf32>
    %c40 = arith.constant 40 : index
    %c0_17 = arith.constant 0 : index
    %55 = vector.load %arg2[%c40, %c0_17] : memref<288x128xf32, #tpu.memory_space<vmem>>, vector<8x8xf32>
    %cst_18 = arith.constant dense<0.000000e+00> : vector<8x128xf32>
    %56 = tpu.matmul %55, %54, %cst_18 {dimension_numbers = #tpu.dot_dimension_numbers<[1], [0], [0], [1], [0, 0, 1, 1], [], []>} : vector<8x8xf32>, vector<8x128xf32>, vector<8x128xf32> -> vector<8x128xf32>
    %c1_i32_19 = arith.constant 1 : i32
    %57 = tpu.dynamic_rotate %51 by %c1_i32_19 dim 1 : vector<8x128xf32>, i32 -> vector<8x128xf32>
    %58 = vector.broadcast %20 : vector<1x128xf32> to vector<8x128xf32>
    %59 = arith.mulf %57, %58 : vector<8x128xf32>
    %c48 = arith.constant 48 : index
    %c0_20 = arith.constant 0 : index
    %60 = vector.load %arg2[%c48, %c0_20] : memref<288x128xf32, #tpu.memory_space<vmem>>, vector<8x8xf32>
    %cst_21 = arith.constant dense<0.000000e+00> : vector<8x128xf32>
    %61 = tpu.matmul %60, %59, %cst_21 {dimension_numbers = #tpu.dot_dimension_numbers<[1], [0], [0], [1], [0, 0, 1, 1], [], []>} : vector<8x8xf32>, vector<8x128xf32>, vector<8x128xf32> -> vector<8x128xf32>
    %62 = arith.addf %56, %61 : vector<8x128xf32>
    %c56 = arith.constant 56 : index
    %c0_22 = arith.constant 0 : index
    %63 = vector.load %arg2[%c56, %c0_22] : memref<288x128xf32, #tpu.memory_space<vmem>>, vector<8x8xf32>
    %cst_23 = arith.constant dense<0.000000e+00> : vector<8x128xf32>
    %64 = tpu.matmul %63, %51, %cst_23 {dimension_numbers = #tpu.dot_dimension_numbers<[1], [0], [0], [1], [0, 0, 1, 1], [], []>} : vector<8x8xf32>, vector<8x128xf32>, vector<8x128xf32> -> vector<8x128xf32>
    %65 = arith.addf %62, %64 : vector<8x128xf32>
    %c64 = arith.constant 64 : index
    %c0_24 = arith.constant 0 : index
    %66 = vector.load %arg2[%c64, %c0_24] : memref<288x128xf32, #tpu.memory_space<vmem>>, vector<8x128xf32>
    %67 = arith.addf %65, %66 : vector<8x128xf32>
    %cst_25 = arith.constant 0.000000e+00 : f32
    %68 = vector.broadcast %cst_25 : f32 to vector<8x128xf32>
    %69 = arith.maximumf %67, %68 : vector<8x128xf32>
    %70 = arith.addf %69, %45 : vector<8x128xf32>
    %cst_26 = arith.constant 0.000000e+00 : f32
    %71 = vector.broadcast %cst_26 : f32 to vector<8x128xf32>
    %72 = arith.maximumf %70, %71 : vector<8x128xf32>
    %c4_i32_27 = arith.constant 4 : i32
    %73 = tpu.dynamic_rotate %72 by %c4_i32_27 dim 1 : vector<8x128xf32>, i32 -> vector<8x128xf32>
    %74 = vector.broadcast %28 : vector<1x128xf32> to vector<8x128xf32>
    %75 = arith.mulf %73, %74 : vector<8x128xf32>
    %c80 = arith.constant 80 : index
    %c0_28 = arith.constant 0 : index
    %76 = vector.load %arg2[%c80, %c0_28] : memref<288x128xf32, #tpu.memory_space<vmem>>, vector<8x8xf32>
    %cst_29 = arith.constant dense<0.000000e+00> : vector<8x128xf32>
    %77 = tpu.matmul %76, %75, %cst_29 {dimension_numbers = #tpu.dot_dimension_numbers<[1], [0], [0], [1], [0, 0, 1, 1], [], []>} : vector<8x8xf32>, vector<8x128xf32>, vector<8x128xf32> -> vector<8x128xf32>
    %c2_i32_30 = arith.constant 2 : i32
    %78 = tpu.dynamic_rotate %72 by %c2_i32_30 dim 1 : vector<8x128xf32>, i32 -> vector<8x128xf32>
    %79 = vector.broadcast %24 : vector<1x128xf32> to vector<8x128xf32>
    %80 = arith.mulf %78, %79 : vector<8x128xf32>
    %c88 = arith.constant 88 : index
    %c0_31 = arith.constant 0 : index
    %81 = vector.load %arg2[%c88, %c0_31] : memref<288x128xf32, #tpu.memory_space<vmem>>, vector<8x8xf32>
    %cst_32 = arith.constant dense<0.000000e+00> : vector<8x128xf32>
    %82 = tpu.matmul %81, %80, %cst_32 {dimension_numbers = #tpu.dot_dimension_numbers<[1], [0], [0], [1], [0, 0, 1, 1], [], []>} : vector<8x8xf32>, vector<8x128xf32>, vector<8x128xf32> -> vector<8x128xf32>
    %83 = arith.addf %77, %82 : vector<8x128xf32>
    %c96 = arith.constant 96 : index
    %c0_33 = arith.constant 0 : index
    %84 = vector.load %arg2[%c96, %c0_33] : memref<288x128xf32, #tpu.memory_space<vmem>>, vector<8x8xf32>
    %cst_34 = arith.constant dense<0.000000e+00> : vector<8x128xf32>
    %85 = tpu.matmul %84, %72, %cst_34 {dimension_numbers = #tpu.dot_dimension_numbers<[1], [0], [0], [1], [0, 0, 1, 1], [], []>} : vector<8x8xf32>, vector<8x128xf32>, vector<8x128xf32> -> vector<8x128xf32>
    %86 = arith.addf %83, %85 : vector<8x128xf32>
    %c104 = arith.constant 104 : index
    %c0_35 = arith.constant 0 : index
    %87 = vector.load %arg2[%c104, %c0_35] : memref<288x128xf32, #tpu.memory_space<vmem>>, vector<8x128xf32>
    %88 = arith.addf %86, %87 : vector<8x128xf32>
    %cst_36 = arith.constant 0.000000e+00 : f32
    %89 = vector.broadcast %cst_36 : f32 to vector<8x128xf32>
    %90 = arith.maximumf %88, %89 : vector<8x128xf32>
    %c4_i32_37 = arith.constant 4 : i32
    %91 = tpu.dynamic_rotate %90 by %c4_i32_37 dim 1 : vector<8x128xf32>, i32 -> vector<8x128xf32>
    %92 = vector.broadcast %28 : vector<1x128xf32> to vector<8x128xf32>
    %93 = arith.mulf %91, %92 : vector<8x128xf32>
    %c112 = arith.constant 112 : index
    %c0_38 = arith.constant 0 : index
    %94 = vector.load %arg2[%c112, %c0_38] : memref<288x128xf32, #tpu.memory_space<vmem>>, vector<8x8xf32>
    %cst_39 = arith.constant dense<0.000000e+00> : vector<8x128xf32>
    %95 = tpu.matmul %94, %93, %cst_39 {dimension_numbers = #tpu.dot_dimension_numbers<[1], [0], [0], [1], [0, 0, 1, 1], [], []>} : vector<8x8xf32>, vector<8x128xf32>, vector<8x128xf32> -> vector<8x128xf32>
    %c2_i32_40 = arith.constant 2 : i32
    %96 = tpu.dynamic_rotate %90 by %c2_i32_40 dim 1 : vector<8x128xf32>, i32 -> vector<8x128xf32>
    %97 = vector.broadcast %24 : vector<1x128xf32> to vector<8x128xf32>
    %98 = arith.mulf %96, %97 : vector<8x128xf32>
    %c120 = arith.constant 120 : index
    %c0_41 = arith.constant 0 : index
    %99 = vector.load %arg2[%c120, %c0_41] : memref<288x128xf32, #tpu.memory_space<vmem>>, vector<8x8xf32>
    %cst_42 = arith.constant dense<0.000000e+00> : vector<8x128xf32>
    %100 = tpu.matmul %99, %98, %cst_42 {dimension_numbers = #tpu.dot_dimension_numbers<[1], [0], [0], [1], [0, 0, 1, 1], [], []>} : vector<8x8xf32>, vector<8x128xf32>, vector<8x128xf32> -> vector<8x128xf32>
    %101 = arith.addf %95, %100 : vector<8x128xf32>
    %c128 = arith.constant 128 : index
    %c0_43 = arith.constant 0 : index
    %102 = vector.load %arg2[%c128, %c0_43] : memref<288x128xf32, #tpu.memory_space<vmem>>, vector<8x8xf32>
    %cst_44 = arith.constant dense<0.000000e+00> : vector<8x128xf32>
    %103 = tpu.matmul %102, %90, %cst_44 {dimension_numbers = #tpu.dot_dimension_numbers<[1], [0], [0], [1], [0, 0, 1, 1], [], []>} : vector<8x8xf32>, vector<8x128xf32>, vector<8x128xf32> -> vector<8x128xf32>
    %104 = arith.addf %101, %103 : vector<8x128xf32>
    %c136 = arith.constant 136 : index
    %c0_45 = arith.constant 0 : index
    %105 = vector.load %arg2[%c136, %c0_45] : memref<288x128xf32, #tpu.memory_space<vmem>>, vector<8x128xf32>
    %106 = arith.addf %104, %105 : vector<8x128xf32>
    %cst_46 = arith.constant 0.000000e+00 : f32
    %107 = vector.broadcast %cst_46 : f32 to vector<8x128xf32>
    %108 = arith.maximumf %106, %107 : vector<8x128xf32>
    %109 = arith.addf %108, %72 : vector<8x128xf32>
    %cst_47 = arith.constant 0.000000e+00 : f32
    %110 = vector.broadcast %cst_47 : f32 to vector<8x128xf32>
    %111 = arith.maximumf %109, %110 : vector<8x128xf32>
    %c144 = arith.constant 144 : index
    %c0_48 = arith.constant 0 : index
    %112 = vector.load %arg2[%c144, %c0_48] : memref<288x128xf32, #tpu.memory_space<vmem>>, vector<5x8xf32>
    %cst_49 = arith.constant dense<0.000000e+00> : vector<5x128xf32>
    %113 = tpu.matmul %112, %111, %cst_49 {dimension_numbers = #tpu.dot_dimension_numbers<[1], [0], [0], [1], [0, 0, 1, 1], [], []>} : vector<5x8xf32>, vector<8x128xf32>, vector<5x128xf32> -> vector<5x128xf32>
    %c160 = arith.constant 160 : index
    %c0_50 = arith.constant 0 : index
    %114 = vector.load %arg2[%c160, %c0_50] : memref<288x128xf32, #tpu.memory_space<vmem>>, vector<128x2xf32>
    %cst_51 = arith.constant dense<0.000000e+00> : vector<5x2xf32>
    %115 = tpu.matmul %113, %114, %cst_51 {dimension_numbers = #tpu.dot_dimension_numbers<[1], [0], [0], [1], [0, 0, 1, 1], [], []>} : vector<5x128xf32>, vector<128x2xf32>, vector<5x2xf32> -> vector<5x2xf32>
    %c152 = arith.constant 152 : index
    %c0_52 = arith.constant 0 : index
    %116 = vector.load %arg2[%c152, %c0_52] : memref<288x128xf32, #tpu.memory_space<vmem>>, vector<5x2xf32>
    %117 = arith.addf %115, %116 : vector<5x2xf32>
    %c0_53 = arith.constant 0 : index
    %c0_54 = arith.constant 0 : index
    %118 = vector.load %arg3[%c0_53, %c0_54] : memref<5x2xf32, #tpu.memory_space<vmem>>, vector<5x2xf32>
    tpu.vector_store %arg3[%c0_53, %c0_54], %117 {strides = array<i32>} : memref<5x2xf32, #tpu.memory_space<vmem>>, vector<5x2xf32>,
    return
  }
  func.func @transform_0(%arg0: i32) -> (i32, i32) {
    %c0_i32 = arith.constant 0 : i32
    %c0_i32_0 = arith.constant 0 : i32
    %c0_i32_1 = arith.constant 0 : i32
    return %c0_i32, %c0_i32_0 : i32, i32
  }
  func.func @transform_1(%arg0: i32) -> (i32, i32) {
    %c0_i32 = arith.constant 0 : i32
    %c0_i32_0 = arith.constant 0 : i32
    %c0_i32_1 = arith.constant 0 : i32
    return %c0_i32, %c0_i32_0 : i32, i32
  }
  func.func @transform_2(%arg0: i32) -> (i32, i32) {
    %c0_i32 = arith.constant 0 : i32
    %c0_i32_0 = arith.constant 0 : i32
    %c0_i32_1 = arith.constant 0 : i32
    return %c0_i32, %c0_i32_0 : i32, i32
  }
}

</mosaic_0001>

<llo_original>
// kernel: forward.1
$region0: #{forward.1}
  #allocation0 [shape = 'u32[]', space=smem, size = 0x4, offset = 0x4, fixed_abs, tag = 'smem constant byte address 0x4 - core index']
  #allocation1 [shape = 'u32[72,128]{1,0:T(1,128)}', space=vmem, size = 0x9000, scoped, tag = 'internal scratch']
  %s0 = inlined_call_operand.vmem [shape: f32[8,128], index: 0, kind: input, shape index: {}]
  %s1 = inlined_call_operand.hbm [shape: f32[288,128], index: 1, kind: input, shape index: {}]
  %s2 = inlined_call_operand.vmem [shape: f32[5,2], index: 2, kind: output, shape index: {}]
  %s3 = sld [smem:[#allocation0]]
  $region22: #{forward.1} parent=0
    _
  %s5 = ssub.s32 1, %s3
  %s6 = scalar_select 0, %s5, %s3
  $region1: #{forward.1} parent=0
    #allocation2 [shape = 'u8[147456]{0}', space=vmem, size = 0x24000, scoped, tag = 'input window, operand 1, single buffered']
    #allocation3 [shape = 's32[1]{0}', space=sflag, size = 0x4, scoped, tag = 'scoped memory for forward.1']
    %7 = vsyncpa [#allocation3], 0
    // Predicated region
    $region2: #{forward.1} parent=1 // pred_check
      _
    $region3: #{forward.1} parent=1 // pred_check_branch
      %9 = sbr.rel (0) target = $region5
    $region4: #{forward.1} parent=1 // pred_region
      _
    $region5: #{forward.1} parent=1 // pred_fallthru
      _
    // Predicated region
    $region6: #{forward.1} parent=1 // pred_check
      _
    $region7: #{forward.1} parent=1 // pred_check_branch
      %11 = sbr.rel (0) target = $region9
    $region8: #{forward.1} parent=1 // pred_region
      %13 = vsyncadd [#allocation3], 0
      %s14 = sshll.u32 %s1, 4
      %s15 = int_to_ptr.hbm [resolvable:$true] %s14
      %s16 = sshll.u32 [#allocation2], 4
      %s17 = int_to_ptr.vmem [resolvable:$true] %s16
      %22 = dma.hbm_to_vmem [thread:$0]  %s15, 4608, %s17, [#allocation3], 128, 128, 8
    $region9: #{forward.1} parent=1 // pred_fallthru
      _
    // Predicated region
    $region10: #{forward.1} parent=1 // pred_check
      _
    $region11: #{forward.1} parent=1 // pred_check_branch
      %24 = sbr.rel (0) target = $region13
    $region12: #{forward.1} parent=1 // pred_region
      %26 = dma.done [#allocation3], 4608
    $region13: #{forward.1} parent=1 // pred_fallthru
      _
    %v27 = vlaneseq
    %v28 = vand.u32 %v27, 127
    %vm29 = vcmp.lt.s32.totalorder %v28, 0
    %v30 = vsub.s32 0, %v28
    %v31 = vsel %vm29, %v30, %v28
    %v32 = vshrl.u32 %v31, 4
    %v33 = vand.u32 %v31, 15
    %v34 = vsub.s32 0, %v33
    %v35 = vsel %vm29, %v34, %v33
    %vm36 = vcmp.ne.s32.totalorder %v35, 0
    %vm37 = vcmp.lt.s32.totalorder %v35, 0
    %vm38 = vmand %vm37, %vm36
    %v39 = vadd.s32 %v35, 16
    %v40 = vsel %vm38, %v39, %v35
    %vm41 = vcmp.ge.s32.totalorder %v40, 1
    %v42 = vsel %vm41, 1, 0
    %v43 = vcvt.s32.f32 %v42
    %vm44 = vcmp.ge.s32.totalorder %v40, 2
    %v45 = vsel %vm44, 1, 0
    %v46 = vcvt.s32.f32 %v45
    %vm47 = vcmp.ge.s32.totalorder %v40, 4
    %v48 = vsel %vm47, 1, 0
    %v49 = vcvt.s32.f32 %v48
    %v50 = vld [vmem:[%s0] sm:$0xff]
    %51 = vrot.lane.b32.xlu0 %v50, 2
    %v52 = vpop.permute.xlu0 %51
    %v53 = vmul.f32 %v52, %v46
    %v54 = vld [vmem:[#allocation2] sm:$0xff]
    %55 = vrot.lane.b32.xlu0 %v50, 1
    %v56 = vpop.permute.xlu0 %55
    %v57 = vmul.f32 %v56, %v43
    %v58 = vld [vmem:[#allocation2 + $0x8] sm:$0xff]
    %vm59 = vcmask 64512
    %v61 = vsel %vm59, %v58, 0
    %63 = vmatpush.msra.mxu0 0.0
    %64 = vmatpush.msra.mxu0 0.0
    %65 = vmatpush.msra.mxu0 0.0
    %66 = vmatpush.msra.mxu0 0.0
    %67 = vmatpush.msra.mxu0 0.0
    %68 = vmatpush.msra.mxu0 0.0
    %69 = vmatpush.msra.mxu0 0.0
    %70 = vmatpush.msra.mxu0 0.0
    %71 = vmatpush.msra.mxu0 0.0
    %72 = vmatpush.msra.mxu0 0.0
    %73 = vmatpush.msra.mxu0 0.0
    %74 = vmatpush.msra.mxu0 0.0
    %75 = vmatpush.msra.mxu0 0.0
    %76 = vmatpush.msra.mxu0 0.0
    %77 = vmatpush.msra.mxu0 0.0
    %78 = vmatpush.msra.mxu0 %v57
    %79 = vmatmul.f32.gmra.mxu0 %v61
    %v80 = vpop.f32.mrf.mxu0
    %v81 = vadd.f32 0.0, %v80
    %82 = vdwg.mxu0
    %v84 = vsel %vm59, %v54, 0
    %86 = vmatpush.msra.mxu0 0.0
    %87 = vmatpush.msra.mxu0 0.0
    %88 = vmatpush.msra.mxu0 0.0
    %89 = vmatpush.msra.mxu0 0.0
    %90 = vmatpush.msra.mxu0 0.0
    %91 = vmatpush.msra.mxu0 0.0
    %92 = vmatpush.msra.mxu0 0.0
    %93 = vmatpush.msra.mxu0 0.0
    %94 = vmatpush.msra.mxu0 0.0
    %95 = vmatpush.msra.mxu0 0.0
    %96 = vmatpush.msra.mxu0 0.0
    %97 = vmatpush.msra.mxu0 0.0
    %98 = vmatpush.msra.mxu0 0.0
    %99 = vmatpush.msra.mxu0 0.0
    %100 = vmatpush.msra.mxu0 0.0
    %101 = vmatpush.msra.mxu0 %v53
    %102 = vmatmul.f32.gmra.mxu0 %v84
    %v103 = vpop.f32.mrf.mxu0
    %v104 = vadd.f32 %v81, %v103
    %105 = vdwg.mxu0
    %v106 = vld [vmem:[#allocation2 + $0x10] sm:$0xff]
    %v107 = vld [vmem:[#allocation2 + $0x18] sm:$0xff]
    %v109 = vsel %vm59, %v106, 0
    %v112 = vsel %vm59, %v107, 0
    %114 = vmatpush.msra.mxu0 0.0
    %115 = vmatpush.msra.mxu0 0.0
    %116 = vmatpush.msra.mxu0 0.0
    %117 = vmatpush.msra.mxu0 0.0
    %118 = vmatpush.msra.mxu0 0.0
    %119 = vmatpush.msra.mxu0 0.0
    %120 = vmatpush.msra.mxu0 0.0
    %121 = vmatpush.msra.mxu0 0.0
    %122 = vmatpush.msra.mxu0 0.0
    %123 = vmatpush.msra.mxu0 0.0
    %124 = vmatpush.msra.mxu0 0.0
    %125 = vmatpush.msra.mxu0 0.0
    %126 = vmatpush.msra.mxu0 0.0
    %127 = vmatpush.msra.mxu0 0.0
    %128 = vmatpush.msra.mxu0 0.0
    %129 = vmatpush.msra.mxu0 %v50
    %130 = vmatmul.f32.gmra.mxu0 %v109
    %v131 = vpop.f32.mrf.mxu0
    %v132 = vadd.f32 0.0, %v131
    %133 = vmatmul.f32.gmra.mxu0 %v112
    %v134 = vpop.f32.mrf.mxu0
    %v135 = vadd.f32 0.0, %v134
    %136 = vdwg.mxu0
    %v137 = vld [vmem:[#allocation2 + $0x48] sm:$0xff]
    %v138 = vadd.f32 %v135, %v137
    %v139 = vadd.f32 %v104, %v132
    %v140 = vld [vmem:[#allocation2 + $0x20] sm:$0xff]
    %v141 = vadd.f32 %v139, %v140
    %v142 = vmax.f32 %v141, 0.0
    %143 = vrot.lane.b32.xlu0 %v142, 2
    %v144 = vpop.permute.xlu0 %143
    %v145 = vmul.f32 %v144, %v46
    %v146 = vld [vmem:[#allocation2 + $0x28] sm:$0xff]
    %147 = vrot.lane.b32.xlu0 %v142, 1
    %v148 = vpop.permute.xlu0 %147
    %v149 = vmul.f32 %v148, %v43
    %v150 = vld [vmem:[#allocation2 + $0x30] sm:$0xff]
    %v152 = vsel %vm59, %v150, 0
    %154 = vmatpush.msra.mxu0 0.0
    %155 = vmatpush.msra.mxu0 0.0
    %156 = vmatpush.msra.mxu0 0.0
    %157 = vmatpush.msra.mxu0 0.0
    %158 = vmatpush.msra.mxu0 0.0
    %159 = vmatpush.msra.mxu0 0.0
    %160 = vmatpush.msra.mxu0 0.0
    %161 = vmatpush.msra.mxu0 0.0
    %162 = vmatpush.msra.mxu0 0.0
    %163 = vmatpush.msra.mxu0 0.0
    %164 = vmatpush.msra.mxu0 0.0
    %165 = vmatpush.msra.mxu0 0.0
    %166 = vmatpush.msra.mxu0 0.0
    %167 = vmatpush.msra.mxu0 0.0
    %168 = vmatpush.msra.mxu0 0.0
    %169 = vmatpush.msra.mxu0 %v149
    %170 = vmatmul.f32.gmra.mxu0 %v152
    %v171 = vpop.f32.mrf.mxu0
    %v172 = vadd.f32 0.0, %v171
    %173 = vdwg.mxu0
    %v175 = vsel %vm59, %v146, 0
    %177 = vmatpush.msra.mxu0 0.0
    %178 = vmatpush.msra.mxu0 0.0
    %179 = vmatpush.msra.mxu0 0.0
    %180 = vmatpush.msra.mxu0 0.0
    %181 = vmatpush.msra.mxu0 0.0
    %182 = vmatpush.msra.mxu0 0.0
    %183 = vmatpush.msra.mxu0 0.0
    %184 = vmatpush.msra.mxu0 0.0
    %185 = vmatpush.msra.mxu0 0.0
    %186 = vmatpush.msra.mxu0 0.0
    %187 = vmatpush.msra.mxu0 0.0
    %188 = vmatpush.msra.mxu0 0.0
    %189 = vmatpush.msra.mxu0 0.0
    %190 = vmatpush.msra.mxu0 0.0
    %191 = vmatpush.msra.mxu0 0.0
    %192 = vmatpush.msra.mxu0 %v145
    %193 = vmatmul.f32.gmra.mxu0 %v175
    %v194 = vpop.f32.mrf.mxu0
    %v195 = vadd.f32 %v172, %v194
    %196 = vdwg.mxu0
    %v197 = vld [vmem:[#allocation2 + $0x38] sm:$0xff]
    %v199 = vsel %vm59, %v197, 0
    %201 = vmatpush.msra.mxu0 0.0
    %202 = vmatpush.msra.mxu0 0.0
    %203 = vmatpush.msra.mxu0 0.0
    %204 = vmatpush.msra.mxu0 0.0
    %205 = vmatpush.msra.mxu0 0.0
    %206 = vmatpush.msra.mxu0 0.0
    %207 = vmatpush.msra.mxu0 0.0
    %208 = vmatpush.msra.mxu0 0.0
    %209 = vmatpush.msra.mxu0 0.0
    %210 = vmatpush.msra.mxu0 0.0
    %211 = vmatpush.msra.mxu0 0.0
    %212 = vmatpush.msra.mxu0 0.0
    %213 = vmatpush.msra.mxu0 0.0
    %214 = vmatpush.msra.mxu0 0.0
    %215 = vmatpush.msra.mxu0 0.0
    %216 = vmatpush.msra.mxu0 %v142
    %217 = vmatmul.f32.gmra.mxu0 %v199
    %v218 = vpop.f32.mrf.mxu0
    %v219 = vadd.f32 0.0, %v218
    %220 = vdwg.mxu0
    %v221 = vadd.f32 %v195, %v219
    %v222 = vld [vmem:[#allocation2 + $0x40] sm:$0xff]
    %v223 = vadd.f32 %v221, %v222
    %v224 = vmax.f32 %v223, 0.0
    %v225 = vadd.f32 %v224, %v138
    %v226 = vmax.f32 %v225, 0.0
    %227 = vrot.lane.b32.xlu0 %v226, 4
    %v228 = vpop.permute.xlu0 %227
    %v229 = vmul.f32 %v228, %v49
    %v230 = vld [vmem:[#allocation2 + $0x50] sm:$0xff]
    %231 = vrot.lane.b32.xlu0 %v226, 2
    %v232 = vpop.permute.xlu0 %231
    %v233 = vmul.f32 %v232, %v46
    %v234 = vld [vmem:[#allocation2 + $0x58] sm:$0xff]
    %v236 = vsel %vm59, %v234, 0
    %238 = vmatpush.msra.mxu0 0.0
    %239 = vmatpush.msra.mxu0 0.0
    %240 = vmatpush.msra.mxu0 0.0
    %241 = vmatpush.msra.mxu0 0.0
    %242 = vmatpush.msra.mxu0 0.0
    %243 = vmatpush.msra.mxu0 0.0
    %244 = vmatpush.msra.mxu0 0.0
    %245 = vmatpush.msra.mxu0 0.0
    %246 = vmatpush.msra.mxu0 0.0
    %247 = vmatpush.msra.mxu0 0.0
    %248 = vmatpush.msra.mxu0 0.0
    %249 = vmatpush.msra.mxu0 0.0
    %250 = vmatpush.msra.mxu0 0.0
    %251 = vmatpush.msra.mxu0 0.0
    %252 = vmatpush.msra.mxu0 0.0
    %253 = vmatpush.msra.mxu0 %v233
    %254 = vmatmul.f32.gmra.mxu0 %v236
    %v255 = vpop.f32.mrf.mxu0
    %v256 = vadd.f32 0.0, %v255
    %257 = vdwg.mxu0
    %v259 = vsel %vm59, %v230, 0
    %261 = vmatpush.msra.mxu0 0.0
    %262 = vmatpush.msra.mxu0 0.0
    %263 = vmatpush.msra.mxu0 0.0
    %264 = vmatpush.msra.mxu0 0.0
    %265 = vmatpush.msra.mxu0 0.0
    %266 = vmatpush.msra.mxu0 0.0
    %267 = vmatpush.msra.mxu0 0.0
    %268 = vmatpush.msra.mxu0 0.0
    %269 = vmatpush.msra.mxu0 0.0
    %270 = vmatpush.msra.mxu0 0.0
    %271 = vmatpush.msra.mxu0 0.0
    %272 = vmatpush.msra.mxu0 0.0
    %273 = vmatpush.msra.mxu0 0.0
    %274 = vmatpush.msra.mxu0 0.0
    %275 = vmatpush.msra.mxu0 0.0
    %276 = vmatpush.msra.mxu0 %v229
    %277 = vmatmul.f32.gmra.mxu0 %v259
    %v278 = vpop.f32.mrf.mxu0
    %v279 = vadd.f32 %v256, %v278
    %280 = vdwg.mxu0
    %v281 = vld [vmem:[#allocation2 + $0x60] sm:$0xff]
    %v283 = vsel %vm59, %v281, 0
    %285 = vmatpush.msra.mxu0 0.0
    %286 = vmatpush.msra.mxu0 0.0
    %287 = vmatpush.msra.mxu0 0.0
    %288 = vmatpush.msra.mxu0 0.0
    %289 = vmatpush.msra.mxu0 0.0
    %290 = vmatpush.msra.mxu0 0.0
    %291 = vmatpush.msra.mxu0 0.0
    %292 = vmatpush.msra.mxu0 0.0
    %293 = vmatpush.msra.mxu0 0.0
    %294 = vmatpush.msra.mxu0 0.0
    %295 = vmatpush.msra.mxu0 0.0
    %296 = vmatpush.msra.mxu0 0.0
    %297 = vmatpush.msra.mxu0 0.0
    %298 = vmatpush.msra.mxu0 0.0
    %299 = vmatpush.msra.mxu0 0.0
    %300 = vmatpush.msra.mxu0 %v226
    %301 = vmatmul.f32.gmra.mxu0 %v283
    %v302 = vpop.f32.mrf.mxu0
    %v303 = vadd.f32 0.0, %v302
    %304 = vdwg.mxu0
    %v305 = vadd.f32 %v279, %v303
    %v306 = vld [vmem:[#allocation2 + $0x68] sm:$0xff]
    %v307 = vadd.f32 %v305, %v306
    %v308 = vmax.f32 %v307, 0.0
    %309 = vrot.lane.b32.xlu0 %v308, 4
    %v310 = vpop.permute.xlu0 %309
    %v311 = vmul.f32 %v310, %v49
    %v312 = vld [vmem:[#allocation2 + $0x70] sm:$0xff]
    %313 = vrot.lane.b32.xlu0 %v308, 2
    %v314 = vpop.permute.xlu0 %313
    %v315 = vmul.f32 %v314, %v46
    %v316 = vld [vmem:[#allocation2 + $0x78] sm:$0xff]
    %v318 = vsel %vm59, %v316, 0
    %320 = vmatpush.msra.mxu0 0.0
    %321 = vmatpush.msra.mxu0 0.0
    %322 = vmatpush.msra.mxu0 0.0
    %323 = vmatpush.msra.mxu0 0.0
    %324 = vmatpush.msra.mxu0 0.0
    %325 = vmatpush.msra.mxu0 0.0
    %326 = vmatpush.msra.mxu0 0.0
    %327 = vmatpush.msra.mxu0 0.0
    %328 = vmatpush.msra.mxu0 0.0
    %329 = vmatpush.msra.mxu0 0.0
    %330 = vmatpush.msra.mxu0 0.0
    %331 = vmatpush.msra.mxu0 0.0
    %332 = vmatpush.msra.mxu0 0.0
    %333 = vmatpush.msra.mxu0 0.0
    %334 = vmatpush.msra.mxu0 0.0
    %335 = vmatpush.msra.mxu0 %v315
    %336 = vmatmul.f32.gmra.mxu0 %v318
    %v337 = vpop.f32.mrf.mxu0
    %v338 = vadd.f32 0.0, %v337
    %339 = vdwg.mxu0
    %v341 = vsel %vm59, %v312, 0
    %343 = vmatpush.msra.mxu0 0.0
    %344 = vmatpush.msra.mxu0 0.0
    %345 = vmatpush.msra.mxu0 0.0
    %346 = vmatpush.msra.mxu0 0.0
    %347 = vmatpush.msra.mxu0 0.0
    %348 = vmatpush.msra.mxu0 0.0
    %349 = vmatpush.msra.mxu0 0.0
    %350 = vmatpush.msra.mxu0 0.0
    %351 = vmatpush.msra.mxu0 0.0
    %352 = vmatpush.msra.mxu0 0.0
    %353 = vmatpush.msra.mxu0 0.0
    %354 = vmatpush.msra.mxu0 0.0
    %355 = vmatpush.msra.mxu0 0.0
    %356 = vmatpush.msra.mxu0 0.0
    %357 = vmatpush.msra.mxu0 0.0
    %358 = vmatpush.msra.mxu0 %v311
    %359 = vmatmul.f32.gmra.mxu0 %v341
    %v360 = vpop.f32.mrf.mxu0
    %v361 = vadd.f32 %v338, %v360
    %362 = vdwg.mxu0
    %v363 = vld [vmem:[#allocation2 + $0x80] sm:$0xff]
    %v365 = vsel %vm59, %v363, 0
    %367 = vmatpush.msra.mxu0 0.0
    %368 = vmatpush.msra.mxu0 0.0
    %369 = vmatpush.msra.mxu0 0.0
    %370 = vmatpush.msra.mxu0 0.0
    %371 = vmatpush.msra.mxu0 0.0
    %372 = vmatpush.msra.mxu0 0.0
    %373 = vmatpush.msra.mxu0 0.0
    %374 = vmatpush.msra.mxu0 0.0
    %375 = vmatpush.msra.mxu0 0.0
    %376 = vmatpush.msra.mxu0 0.0
    %377 = vmatpush.msra.mxu0 0.0
    %378 = vmatpush.msra.mxu0 0.0
    %379 = vmatpush.msra.mxu0 0.0
    %380 = vmatpush.msra.mxu0 0.0
    %381 = vmatpush.msra.mxu0 0.0
    %382 = vmatpush.msra.mxu0 %v308
    %383 = vmatmul.f32.gmra.mxu0 %v365
    %v384 = vpop.f32.mrf.mxu0
    %v385 = vadd.f32 0.0, %v384
    %386 = vdwg.mxu0
    %v387 = vadd.f32 %v361, %v385
    %v388 = vld [vmem:[#allocation2 + $0x88] sm:$0xff]
    %v389 = vadd.f32 %v387, %v388
    %v390 = vmax.f32 %v389, 0.0
    %v391 = vadd.f32 %v390, %v226
    %v392 = vmax.f32 %v391, 0.0
    %v393 = vld [vmem:[#allocation2 + $0x90] sm:$0x1f]
    %v395 = vsel %vm59, %v393, 0
    %397 = vmatpush.msra.mxu0 0.0
    %398 = vmatpush.msra.mxu0 0.0
    %399 = vmatpush.msra.mxu0 0.0
    %400 = vmatpush.msra.mxu0 0.0
    %401 = vmatpush.msra.mxu0 0.0
    %402 = vmatpush.msra.mxu0 0.0
    %403 = vmatpush.msra.mxu0 0.0
    %404 = vmatpush.msra.mxu0 0.0
    %405 = vmatpush.msra.mxu0 0.0
    %406 = vmatpush.msra.mxu0 0.0
    %407 = vmatpush.msra.mxu0 0.0
    %408 = vmatpush.msra.mxu0 0.0
    %409 = vmatpush.msra.mxu0 0.0
    %410 = vmatpush.msra.mxu0 0.0
    %411 = vmatpush.msra.mxu0 0.0
    %412 = vmatpush.msra.mxu0 %v392
    %413 = vmatmul.f32.gmra.mxu0 %v395
    %v414 = vpop.f32.mrf.mxu0
    %v415 = vadd.f32 0.0, %v414
    %416 = vdwg.mxu0
    %v417 = vld [vmem:[#allocation2 + $0xa0] sm:$0xff]
    %v418 = vld [vmem:[#allocation2 + $0xa8] sm:$0xff]
    %v419 = vld [vmem:[#allocation2 + $0xb0] sm:$0xff]
    %v420 = vld [vmem:[#allocation2 + $0xb8] sm:$0xff]
    %v421 = vld [vmem:[#allocation2 + $0xc0] sm:$0xff]
    %v422 = vld [vmem:[#allocation2 + $0xc8] sm:$0xff]
    %v423 = vld [vmem:[#allocation2 + $0xd0] sm:$0xff]
    %v424 = vld [vmem:[#allocation2 + $0xd8] sm:$0xff]
    %v425 = vld [vmem:[#allocation2 + $0xe0] sm:$0xff]
    %v426 = vld [vmem:[#allocation2 + $0xe8] sm:$0xff]
    %v427 = vld [vmem:[#allocation2 + $0xf0] sm:$0xff]
    %v428 = vld [vmem:[#allocation2 + $0xf8] sm:$0xff]
    %v429 = vld [vmem:[#allocation2 + $0x100] sm:$0xff]
    %v430 = vld [vmem:[#allocation2 + $0x108] sm:$0xff]
    %v431 = vld [vmem:[#allocation2 + $0x110] sm:$0xff]
    %v432 = vld [vmem:[#allocation2 + $0x118] sm:$0xff]
    %v433 = vld [vmem:[#allocation2 + $0x98] sm:$0x1f]
    %434 = vmatpush.msra.mxu0 %v432
    %435 = vmatpush.msra.mxu0 %v431
    %436 = vmatpush.msra.mxu0 %v430
    %437 = vmatpush.msra.mxu0 %v429
    %438 = vmatpush.msra.mxu0 %v428
    %439 = vmatpush.msra.mxu0 %v427
    %440 = vmatpush.msra.mxu0 %v426
    %441 = vmatpush.msra.mxu0 %v425
    %442 = vmatpush.msra.mxu0 %v424
    %443 = vmatpush.msra.mxu0 %v423
    %444 = vmatpush.msra.mxu0 %v422
    %445 = vmatpush.msra.mxu0 %v421
    %446 = vmatpush.msra.mxu0 %v420
    %447 = vmatpush.msra.mxu0 %v419
    %448 = vmatpush.msra.mxu0 %v418
    %449 = vmatpush.msra.mxu0 %v417
    %450 = vmatmul.f32.gmra.mxu0 %v415
    %v451 = vpop.f32.mrf.mxu0
    %v452 = vadd.f32 %v433, %v451
    %453 = vdwg.mxu0
    %vm454 = vcmask 12288
    %455 = vst.msk [vmem:[%s2] sm:$0x1f] %vm454, %v452
    // Predicated region
    $region14: #{forward.1} parent=1 // pred_check
      _
    $region15: #{forward.1} parent=1 // pred_check_branch
      %457 = sbr.rel (0) target = $region17
    $region16: #{forward.1} parent=1 // pred_region
      _
    $region17: #{forward.1} parent=1 // pred_fallthru
      _
    // Predicated region
    $region18: #{forward.1} parent=1 // pred_check
      _
    $region19: #{forward.1} parent=1 // pred_check_branch
      %459 = sbr.rel (0) target = $region21
    $region20: #{forward.1} parent=1 // pred_region
      _
    $region21: #{forward.1} parent=1 // pred_fallthru
      _
    %460 = vsyncpa [#allocation3], 1

</llo_original>
